<compile_context>
chip_gen: v7x
topology: tpu7x:2x2x1
jax: 0.10.0
libtpu: 0.0.40
codegen_flags: <defaults>
</compile_context>

<pallas_src>
import jax
import jax.numpy as jnp
from jax.experimental import pallas as pl
from jax.experimental.pallas import tpu as pltpu

_BN_EPS = 1e-5
_POE_EPS = 1e-8


def _batchnorm(h):
    # BatchNorm1d training mode: batch mean, biased variance, gamma=1, beta=0.
    mean = jnp.mean(h, axis=0, keepdims=True)
    c = h - mean                                   # centered temp reused twice
    var = jnp.mean(c * c, axis=0, keepdims=True)
    return c * jax.lax.rsqrt(var + _BN_EPS)        # rsqrt -> EUP slot


def mvae_projector_kernel(x_ref, y_ref,
                          w1x_ref, b1x_ref, w2x_ref, b2x_ref,
                          w1y_ref, b1y_ref, w2y_ref, b2y_ref,
                          mu_ref):
    z_ch = mu_ref.shape[1]

    def encode(v_ref, w1_ref, b1_ref, w2_ref, b2_ref):
        # Both encoders of one modality packed along lanes: (N, in) @ (in, 2h).
        h = jnp.dot(v_ref[...].astype(jnp.bfloat16), w1_ref[...],
                    preferred_element_type=jnp.float32) + b1_ref[...]
        h = jnp.maximum(_batchnorm(h), 0.0)            # BN -> ReLU
        # Per-modality block-diagonal Linear2: (N, 2h) @ (2h, 2z) = [mu | logvar].
        o = jnp.dot(h.astype(jnp.bfloat16), w2_ref[...],
                    preferred_element_type=jnp.float32) + b2_ref[...]
        o = _batchnorm(o)
        return o[:, :z_ch], o[:, z_ch:]

    x_mu, x_lv = encode(x_ref, w1x_ref, b1x_ref, w2x_ref, b2x_ref)
    y_mu, y_lv = encode(y_ref, w1y_ref, b1y_ref, w2y_ref, b2y_ref)

    # Product of experts with the unit-Gaussian prior expert (mu=0, logvar=0).
    t0 = 1.0 / (1.0 + _POE_EPS)
    tx = pl.reciprocal(jnp.exp(x_lv) + _POE_EPS, approx=False)
    ty = pl.reciprocal(jnp.exp(y_lv) + _POE_EPS, approx=False)
    mu_ref[...] = (x_mu * tx + y_mu * ty) * pl.reciprocal(t0 + tx + ty, approx=False)


@jax.jit
def mvae_projector_forward(x, y, w1x, b1x, w2x, b2x, w1y, b1y, w2y, b2y):
    n, x_ch = x.shape
    y_ch = y.shape[1]
    hx2, hy2 = w1x.shape[1], w1y.shape[1]
    zx2, zy2 = w2x.shape[1], w2y.shape[1]
    z_ch = zx2 // 2

    operands = (x, y, w1x, b1x, w2x, b2x, w1y, b1y, w2y, b2y)
    buf_bytes = sum(int(a.size) * a.dtype.itemsize for a in operands) + n * z_ch * 4
    # Double-buffered operands + generous compiler-scratch headroom.
    vmem_limit = 2 * buf_bytes + (4 << 20)

    mm_flops = 2 * n * (x_ch * hx2 + y_ch * hy2 + hx2 * zx2 + hy2 * zy2)
    vec_flops = 12 * n * (hx2 + hy2 + zx2 + zy2)           # BN + ReLU + PoE, rough
    transcendentals = 5 * n * z_ch + 2 * (hx2 + hy2 + zx2 + zy2)

    vmem = lambda: pl.BlockSpec(memory_space=pltpu.MemorySpace.VMEM)
    return pl.pallas_call(
        mvae_projector_kernel,
        out_shape=jax.ShapeDtypeStruct((n, z_ch), jnp.float32),
        in_specs=[vmem() for _ in range(10)],
        out_specs=vmem(),
        compiler_params=pltpu.CompilerParams(vmem_limit_bytes=int(vmem_limit)),
        cost_estimate=pl.CostEstimate(flops=mm_flops + vec_flops,
                                      transcendentals=transcendentals,
                                      bytes_accessed=buf_bytes),
    )(*operands)


def make_projector_params(key, in_channels, out_channels, res_expansion=2.0):
    hidden = int(in_channels * res_expansion)
    k1, k2 = jax.random.split(key)
    # nn.init.eye_ on the (out, in) Linear weight == rectangular identity; stored
    # transposed as (in, out) so the kernel computes v @ W directly on the MXU.
    w1 = jnp.eye(in_channels, hidden, dtype=jnp.float32)
    w2 = jnp.eye(hidden, out_channels, dtype=jnp.float32)
    lim1 = 1.0 / float(in_channels) ** 0.5
    lim2 = 1.0 / float(hidden) ** 0.5
    b1 = jax.random.uniform(k1, (1, hidden), jnp.float32, -lim1, lim1)
    b2 = jax.random.uniform(k2, (1, out_channels), jnp.float32, -lim2, lim2)
    return w1, b1, w2, b2


def pack_modality(enc_mu, enc_lv, z_ch):
    """Pack one modality's mu/logvar encoders: dense (in, 2h) W1, (2h, 2z) W2."""
    w1_m, b1_m, w2_m, b2_m = enc_mu
    w1_l, b1_l, w2_l, b2_l = enc_lv
    h = w1_m.shape[1]
    w1 = jnp.concatenate([w1_m, w1_l], axis=1)               # (in, 2h), fully dense
    b1 = jnp.concatenate([b1_m, b1_l], axis=1)                # (1, 2h)
    w2 = jnp.zeros((2 * h, 2 * z_ch), jnp.float32)            # (2h, 2z) block-diag
    w2 = w2.at[:h, :z_ch].set(w2_m)
    w2 = w2.at[h:, z_ch:].set(w2_l)
    b2 = jnp.concatenate([b2_m, b2_l], axis=1)                # (1, 2z)
    # bf16 matmul operands (eye weights exact in bf16); biases stay f32.
    return w1.astype(jnp.bfloat16), b1, w2.astype(jnp.bfloat16), b2


# ----------------------------- plain-JAX references ----------------------------

def _ref_projector_f32(v, w1, b1, w2, b2):
    h = v @ w1 + b1
    m = h.mean(0, keepdims=True)
    var = ((h - m) ** 2).mean(0, keepdims=True)
    h = jnp.maximum((h - m) / jnp.sqrt(var + _BN_EPS), 0.0)
    o = h @ w2 + b2
    m2 = o.mean(0, keepdims=True)
    v2 = ((o - m2) ** 2).mean(0, keepdims=True)
    return (o - m2) / jnp.sqrt(v2 + _BN_EPS)


def _ref_forward_f32(x, y, enc_xmu, enc_xlv, enc_ymu, enc_ylv):
    # Faithful per-encoder f32 path (mirrors the PyTorch module exactly).
    x_mu = _ref_projector_f32(x, *enc_xmu)
    x_lv = _ref_projector_f32(x, *enc_xlv)
    y_mu = _ref_projector_f32(y, *enc_ymu)
    y_lv = _ref_projector_f32(y, *enc_ylv)
    t0 = 1.0 / (1.0 + _POE_EPS)
    tx = 1.0 / (jnp.exp(x_lv) + _POE_EPS)
    ty = 1.0 / (jnp.exp(y_lv) + _POE_EPS)
    return (x_mu * tx + y_mu * ty) / (t0 + tx + ty)


def _ref_forward_packed(x, y, px, py, z_ch):
    # Same packed / bf16-matmul numerics as the kernel, in plain JAX.
    def enc(v, w1, b1, w2, b2):
        h = jnp.dot(v.astype(jnp.bfloat16), w1,
                    preferred_element_type=jnp.float32) + b1
        h = jnp.maximum(_batchnorm(h), 0.0)
        o = jnp.dot(h.astype(jnp.bfloat16), w2,
                    preferred_element_type=jnp.float32) + b2
        o = _batchnorm(o)
        return o[:, :z_ch], o[:, z_ch:]

    x_mu, x_lv = enc(x, *px)
    y_mu, y_lv = enc(y, *py)
    t0 = 1.0 / (1.0 + _POE_EPS)
    tx = 1.0 / (jnp.exp(x_lv) + _POE_EPS)
    ty = 1.0 / (jnp.exp(y_lv) + _POE_EPS)
    return (x_mu * tx + y_mu * ty) / (t0 + tx + ty)


if __name__ == "__main__":
    N, X_CH, Y_CH, Z_CH, RES_EXP = 8, 32, 32, 16, 2.0

    key = jax.random.PRNGKey(0)
    kx, ky, kxm, kxl, kym, kyl = jax.random.split(key, 6)

    x = jax.random.normal(kx, (N, X_CH), jnp.float32)
    y = jax.random.normal(ky, (N, Y_CH), jnp.float32)

    enc_xmu = make_projector_params(kxm, X_CH, Z_CH, RES_EXP)
    enc_xlv = make_projector_params(kxl, X_CH, Z_CH, RES_EXP)
    enc_ymu = make_projector_params(kym, Y_CH, Z_CH, RES_EXP)
    enc_ylv = make_projector_params(kyl, Y_CH, Z_CH, RES_EXP)
    # x_decoder / y_decoder params exist in the PyTorch module but their outputs
    # are discarded when all_loss is None, so they are intentionally not built.

    px = pack_modality(enc_xmu, enc_xlv, Z_CH)   # (w1x, b1x, w2x, b2x)
    py = pack_modality(enc_ymu, enc_ylv, Z_CH)   # (w1y, b1y, w2y, b2y)

    mu = mvae_projector_forward(x, y, *px, *py)
    jax.block_until_ready(mu)

    # 1) Kernel vs the identically-packed bf16-matmul JAX reference (tight check).
    mu_packed = _ref_forward_packed(x, y, px, py, Z_CH)
    err_packed = float(jnp.max(jnp.abs(mu - mu_packed)))
    assert err_packed < 1e-3, f"kernel vs packed-bf16 ref: max abs err {err_packed}"

    # 2) Kernel vs faithful f32 per-encoder reference: the kernel must be no worse
    #    than the bf16-MXU numerics themselves (self-calibrating bound).
    mu_f32 = _ref_forward_f32(x, y, enc_xmu, enc_xlv, enc_ymu, enc_ylv)
    err_f32 = float(jnp.max(jnp.abs(mu - mu_f32)))
    err_pack_vs_f32 = float(jnp.max(jnp.abs(mu_packed - mu_f32)))
    assert err_f32 <= err_pack_vs_f32 + 1e-3, (
        f"kernel vs f32 ref {err_f32} exceeds bf16-numerics bound {err_pack_vs_f32}")

    print("KERNEL_OK")
</pallas_src>

<mosaic_0001>
module attributes {stable_mosaic.version = 11 : i64} {
  func.func @mvae_projector_kernel(%arg0: memref<8x32xf32, #tpu.memory_space<vmem>>, %arg1: memref<8x32xf32, #tpu.memory_space<vmem>>, %arg2: memref<32x128xbf16, #tpu.memory_space<vmem>>, %arg3: memref<1x128xf32, #tpu.memory_space<vmem>>, %arg4: memref<128x32xbf16, #tpu.memory_space<vmem>>, %arg5: memref<1x32xf32, #tpu.memory_space<vmem>>, %arg6: memref<32x128xbf16, #tpu.memory_space<vmem>>, %arg7: memref<1x128xf32, #tpu.memory_space<vmem>>, %arg8: memref<128x32xbf16, #tpu.memory_space<vmem>>, %arg9: memref<1x32xf32, #tpu.memory_space<vmem>>, %arg10: memref<8x16xf32, #tpu.memory_space<vmem>>) attributes {dimension_semantics = [], scalar_prefetch = 0 : i64, scratch_operands = 0 : i64, tpu.core_type = #tpu.core_type<tc>} {
    %c0 = arith.constant 0 : index
    %c0_0 = arith.constant 0 : index
    %0 = vector.load %arg0[%c0, %c0_0] : memref<8x32xf32, #tpu.memory_space<vmem>>, vector<8x32xf32>
    %1 = arith.truncf %0 : vector<8x32xf32> to vector<8x32xbf16>
    %c0_1 = arith.constant 0 : index
    %c0_2 = arith.constant 0 : index
    %2 = vector.load %arg2[%c0_1, %c0_2] : memref<32x128xbf16, #tpu.memory_space<vmem>>, vector<32x128xbf16>
    %cst = arith.constant dense<0.000000e+00> : vector<8x128xf32>
    %3 = tpu.matmul %1, %2, %cst {dimension_numbers = #tpu.dot_dimension_numbers<[1], [0], [0], [1], [0, 0, 1, 1], [], []>} : vector<8x32xbf16>, vector<32x128xbf16>, vector<8x128xf32> -> vector<8x128xf32>
    %c0_3 = arith.constant 0 : index
    %c0_4 = arith.constant 0 : index
    %4 = vector.load %arg3[%c0_3, %c0_4] : memref<1x128xf32, #tpu.memory_space<vmem>>, vector<1x128xf32>
    %5 = vector.broadcast %4 : vector<1x128xf32> to vector<8x128xf32>
    %6 = arith.addf %3, %5 : vector<8x128xf32>
    %cst_5 = arith.constant dense<0.000000e+00> : vector<128xf32>
    %7 = vector.multi_reduction <add>, %6, %cst_5 [0] : vector<8x128xf32> to vector<128xf32>
    %8 = vector.shape_cast %7 : vector<128xf32> to vector<1x128xf32>
    %cst_6 = arith.constant 8.000000e+00 : f32
    %9 = vector.broadcast %cst_6 : f32 to vector<1x128xf32>
    %10 = arith.divf %8, %9 : vector<1x128xf32>
    %11 = vector.broadcast %10 : vector<1x128xf32> to vector<8x128xf32>
    %12 = arith.subf %6, %11 : vector<8x128xf32>
    %13 = arith.mulf %12, %12 : vector<8x128xf32>
    %cst_7 = arith.constant dense<0.000000e+00> : vector<128xf32>
    %14 = vector.multi_reduction <add>, %13, %cst_7 [0] : vector<8x128xf32> to vector<128xf32>
    %15 = vector.shape_cast %14 : vector<128xf32> to vector<1x128xf32>
    %cst_8 = arith.constant 8.000000e+00 : f32
    %16 = vector.broadcast %cst_8 : f32 to vector<1x128xf32>
    %17 = arith.divf %15, %16 : vector<1x128xf32>
    %cst_9 = arith.constant 9.99999974E-6 : f32
    %18 = vector.broadcast %cst_9 : f32 to vector<1x128xf32>
    %19 = arith.addf %17, %18 : vector<1x128xf32>
    %20 = math.rsqrt %19 : vector<1x128xf32>
    %21 = vector.broadcast %20 : vector<1x128xf32> to vector<8x128xf32>
    %22 = arith.mulf %12, %21 : vector<8x128xf32>
    %cst_10 = arith.constant 0.000000e+00 : f32
    %23 = vector.broadcast %cst_10 : f32 to vector<8x128xf32>
    %24 = arith.maximumf %22, %23 : vector<8x128xf32>
    %25 = arith.truncf %24 : vector<8x128xf32> to vector<8x128xbf16>
    %c0_11 = arith.constant 0 : index
    %c0_12 = arith.constant 0 : index
    %26 = vector.load %arg4[%c0_11, %c0_12] : memref<128x32xbf16, #tpu.memory_space<vmem>>, vector<128x32xbf16>
    %cst_13 = arith.constant dense<0.000000e+00> : vector<8x32xf32>
    %27 = tpu.matmul %25, %26, %cst_13 {dimension_numbers = #tpu.dot_dimension_numbers<[1], [0], [0], [1], [0, 0, 1, 1], [], []>} : vector<8x128xbf16>, vector<128x32xbf16>, vector<8x32xf32> -> vector<8x32xf32>
    %c0_14 = arith.constant 0 : index
    %c0_15 = arith.constant 0 : index
    %28 = vector.load %arg5[%c0_14, %c0_15] : memref<1x32xf32, #tpu.memory_space<vmem>>, vector<1x32xf32>
    %29 = vector.broadcast %28 : vector<1x32xf32> to vector<8x32xf32>
    %30 = arith.addf %27, %29 : vector<8x32xf32>
    %cst_16 = arith.constant dense<0.000000e+00> : vector<32xf32>
    %31 = vector.multi_reduction <add>, %30, %cst_16 [0] : vector<8x32xf32> to vector<32xf32>
    %32 = vector.shape_cast %31 : vector<32xf32> to vector<1x32xf32>
    %cst_17 = arith.constant 8.000000e+00 : f32
    %33 = vector.broadcast %cst_17 : f32 to vector<1x32xf32>
    %34 = arith.divf %32, %33 : vector<1x32xf32>
    %35 = vector.broadcast %34 : vector<1x32xf32> to vector<8x32xf32>
    %36 = arith.subf %30, %35 : vector<8x32xf32>
    %37 = arith.mulf %36, %36 : vector<8x32xf32>
    %cst_18 = arith.constant dense<0.000000e+00> : vector<32xf32>
    %38 = vector.multi_reduction <add>, %37, %cst_18 [0] : vector<8x32xf32> to vector<32xf32>
    %39 = vector.shape_cast %38 : vector<32xf32> to vector<1x32xf32>
    %cst_19 = arith.constant 8.000000e+00 : f32
    %40 = vector.broadcast %cst_19 : f32 to vector<1x32xf32>
    %41 = arith.divf %39, %40 : vector<1x32xf32>
    %cst_20 = arith.constant 9.99999974E-6 : f32
    %42 = vector.broadcast %cst_20 : f32 to vector<1x32xf32>
    %43 = arith.addf %41, %42 : vector<1x32xf32>
    %44 = math.rsqrt %43 : vector<1x32xf32>
    %45 = vector.broadcast %44 : vector<1x32xf32> to vector<8x32xf32>
    %46 = arith.mulf %36, %45 : vector<8x32xf32>
    %47 = vector.extract_strided_slice %46 {offsets = [0, 0], sizes = [8, 16], strides = [1, 1]} : vector<8x32xf32> to vector<8x16xf32>
    %48 = vector.extract_strided_slice %46 {offsets = [0, 16], sizes = [8, 16], strides = [1, 1]} : vector<8x32xf32> to vector<8x16xf32>
    %c0_21 = arith.constant 0 : index
    %c0_22 = arith.constant 0 : index
    %49 = vector.load %arg1[%c0_21, %c0_22] : memref<8x32xf32, #tpu.memory_space<vmem>>, vector<8x32xf32>
    %50 = arith.truncf %49 : vector<8x32xf32> to vector<8x32xbf16>
    %c0_23 = arith.constant 0 : index
    %c0_24 = arith.constant 0 : index
    %51 = vector.load %arg6[%c0_23, %c0_24] : memref<32x128xbf16, #tpu.memory_space<vmem>>, vector<32x128xbf16>
    %cst_25 = arith.constant dense<0.000000e+00> : vector<8x128xf32>
    %52 = tpu.matmul %50, %51, %cst_25 {dimension_numbers = #tpu.dot_dimension_numbers<[1], [0], [0], [1], [0, 0, 1, 1], [], []>} : vector<8x32xbf16>, vector<32x128xbf16>, vector<8x128xf32> -> vector<8x128xf32>
    %c0_26 = arith.constant 0 : index
    %c0_27 = arith.constant 0 : index
    %53 = vector.load %arg7[%c0_26, %c0_27] : memref<1x128xf32, #tpu.memory_space<vmem>>, vector<1x128xf32>
    %54 = vector.broadcast %53 : vector<1x128xf32> to vector<8x128xf32>
    %55 = arith.addf %52, %54 : vector<8x128xf32>
    %cst_28 = arith.constant dense<0.000000e+00> : vector<128xf32>
    %56 = vector.multi_reduction <add>, %55, %cst_28 [0] : vector<8x128xf32> to vector<128xf32>
    %57 = vector.shape_cast %56 : vector<128xf32> to vector<1x128xf32>
    %cst_29 = arith.constant 8.000000e+00 : f32
    %58 = vector.broadcast %cst_29 : f32 to vector<1x128xf32>
    %59 = arith.divf %57, %58 : vector<1x128xf32>
    %60 = vector.broadcast %59 : vector<1x128xf32> to vector<8x128xf32>
    %61 = arith.subf %55, %60 : vector<8x128xf32>
    %62 = arith.mulf %61, %61 : vector<8x128xf32>
    %cst_30 = arith.constant dense<0.000000e+00> : vector<128xf32>
    %63 = vector.multi_reduction <add>, %62, %cst_30 [0] : vector<8x128xf32> to vector<128xf32>
    %64 = vector.shape_cast %63 : vector<128xf32> to vector<1x128xf32>
    %cst_31 = arith.constant 8.000000e+00 : f32
    %65 = vector.broadcast %cst_31 : f32 to vector<1x128xf32>
    %66 = arith.divf %64, %65 : vector<1x128xf32>
    %cst_32 = arith.constant 9.99999974E-6 : f32
    %67 = vector.broadcast %cst_32 : f32 to vector<1x128xf32>
    %68 = arith.addf %66, %67 : vector<1x128xf32>
    %69 = math.rsqrt %68 : vector<1x128xf32>
    %70 = vector.broadcast %69 : vector<1x128xf32> to vector<8x128xf32>
    %71 = arith.mulf %61, %70 : vector<8x128xf32>
    %cst_33 = arith.constant 0.000000e+00 : f32
    %72 = vector.broadcast %cst_33 : f32 to vector<8x128xf32>
    %73 = arith.maximumf %71, %72 : vector<8x128xf32>
    %74 = arith.truncf %73 : vector<8x128xf32> to vector<8x128xbf16>
    %c0_34 = arith.constant 0 : index
    %c0_35 = arith.constant 0 : index
    %75 = vector.load %arg8[%c0_34, %c0_35] : memref<128x32xbf16, #tpu.memory_space<vmem>>, vector<128x32xbf16>
    %cst_36 = arith.constant dense<0.000000e+00> : vector<8x32xf32>
    %76 = tpu.matmul %74, %75, %cst_36 {dimension_numbers = #tpu.dot_dimension_numbers<[1], [0], [0], [1], [0, 0, 1, 1], [], []>} : vector<8x128xbf16>, vector<128x32xbf16>, vector<8x32xf32> -> vector<8x32xf32>
    %c0_37 = arith.constant 0 : index
    %c0_38 = arith.constant 0 : index
    %77 = vector.load %arg9[%c0_37, %c0_38] : memref<1x32xf32, #tpu.memory_space<vmem>>, vector<1x32xf32>
    %78 = vector.broadcast %77 : vector<1x32xf32> to vector<8x32xf32>
    %79 = arith.addf %76, %78 : vector<8x32xf32>
    %cst_39 = arith.constant dense<0.000000e+00> : vector<32xf32>
    %80 = vector.multi_reduction <add>, %79, %cst_39 [0] : vector<8x32xf32> to vector<32xf32>
    %81 = vector.shape_cast %80 : vector<32xf32> to vector<1x32xf32>
    %cst_40 = arith.constant 8.000000e+00 : f32
    %82 = vector.broadcast %cst_40 : f32 to vector<1x32xf32>
    %83 = arith.divf %81, %82 : vector<1x32xf32>
    %84 = vector.broadcast %83 : vector<1x32xf32> to vector<8x32xf32>
    %85 = arith.subf %79, %84 : vector<8x32xf32>
    %86 = arith.mulf %85, %85 : vector<8x32xf32>
    %cst_41 = arith.constant dense<0.000000e+00> : vector<32xf32>
    %87 = vector.multi_reduction <add>, %86, %cst_41 [0] : vector<8x32xf32> to vector<32xf32>
    %88 = vector.shape_cast %87 : vector<32xf32> to vector<1x32xf32>
    %cst_42 = arith.constant 8.000000e+00 : f32
    %89 = vector.broadcast %cst_42 : f32 to vector<1x32xf32>
    %90 = arith.divf %88, %89 : vector<1x32xf32>
    %cst_43 = arith.constant 9.99999974E-6 : f32
    %91 = vector.broadcast %cst_43 : f32 to vector<1x32xf32>
    %92 = arith.addf %90, %91 : vector<1x32xf32>
    %93 = math.rsqrt %92 : vector<1x32xf32>
    %94 = vector.broadcast %93 : vector<1x32xf32> to vector<8x32xf32>
    %95 = arith.mulf %85, %94 : vector<8x32xf32>
    %96 = vector.extract_strided_slice %95 {offsets = [0, 0], sizes = [8, 16], strides = [1, 1]} : vector<8x32xf32> to vector<8x16xf32>
    %97 = vector.extract_strided_slice %95 {offsets = [0, 16], sizes = [8, 16], strides = [1, 1]} : vector<8x32xf32> to vector<8x16xf32>
    %98 = math.exp %48 : vector<8x16xf32>
    %cst_44 = arith.constant 9.99999993E-9 : f32
    %99 = vector.broadcast %cst_44 : f32 to vector<8x16xf32>
    %100 = arith.addf %98, %99 : vector<8x16xf32>
    %101 = tpu.reciprocal %100 : vector<8x16xf32> -> vector<8x16xf32>
    %102 = math.exp %97 : vector<8x16xf32>
    %cst_45 = arith.constant 9.99999993E-9 : f32
    %103 = vector.broadcast %cst_45 : f32 to vector<8x16xf32>
    %104 = arith.addf %102, %103 : vector<8x16xf32>
    %105 = tpu.reciprocal %104 : vector<8x16xf32> -> vector<8x16xf32>
    %106 = arith.mulf %47, %101 : vector<8x16xf32>
    %107 = arith.mulf %96, %105 : vector<8x16xf32>
    %108 = arith.addf %106, %107 : vector<8x16xf32>
    %cst_46 = arith.constant 1.000000e+00 : f32
    %109 = vector.broadcast %cst_46 : f32 to vector<8x16xf32>
    %110 = arith.addf %109, %101 : vector<8x16xf32>
    %111 = arith.addf %110, %105 : vector<8x16xf32>
    %112 = tpu.reciprocal %111 : vector<8x16xf32> -> vector<8x16xf32>
    %113 = arith.mulf %108, %112 : vector<8x16xf32>
    %c0_47 = arith.constant 0 : index
    %c0_48 = arith.constant 0 : index
    %114 = vector.load %arg10[%c0_47, %c0_48] : memref<8x16xf32, #tpu.memory_space<vmem>>, vector<8x16xf32>
    tpu.vector_store %arg10[%c0_47, %c0_48], %113 {strides = array<i32>} : memref<8x16xf32, #tpu.memory_space<vmem>>, vector<8x16xf32>,
    return
  }
}

</mosaic_0001>

<llo_original>
// kernel: mvae_projector_forward.1
$region0: #{mvae_projector_forward.1}
  #allocation0 [shape = 'u32[]', space=smem, size = 0x4, offset = 0x4, fixed_abs, tag = 'smem constant byte address 0x4 - core index']
  #allocation1 [shape = 'u32[144,128]{1,0:T(1,128)}', space=vmem, size = 0x12000, scoped, tag = 'internal scratch']
  %s0 = inlined_call_operand.vmem [shape: f32[8,32], index: 0, kind: input, shape index: {}]
  %s1 = inlined_call_operand.vmem [shape: f32[8,32], index: 1, kind: input, shape index: {}]
  %s2 = inlined_call_operand.vmem [shape: bf16[32,128], index: 2, kind: input, shape index: {}]
  %s3 = inlined_call_operand.vmem [shape: f32[1,128], index: 3, kind: input, shape index: {}]
  %s4 = inlined_call_operand.vmem [shape: bf16[128,32], index: 4, kind: input, shape index: {}]
  %s5 = inlined_call_operand.vmem [shape: f32[1,32], index: 5, kind: input, shape index: {}]
  %s6 = inlined_call_operand.vmem [shape: bf16[32,128], index: 6, kind: input, shape index: {}]
  %s7 = inlined_call_operand.vmem [shape: f32[1,128], index: 7, kind: input, shape index: {}]
  %s8 = inlined_call_operand.vmem [shape: bf16[128,32], index: 8, kind: input, shape index: {}]
  %s9 = inlined_call_operand.vmem [shape: f32[1,32], index: 9, kind: input, shape index: {}]
  %s10 = inlined_call_operand.hbm [shape: f32[8,16], index: 10, kind: output, shape index: {}]
  %s11 = sld [smem:[#allocation0]]
  $region50: #{mvae_projector_forward.1} parent=0
    _
  %s13 = ssub.s32 1, %s11
  %s14 = scalar_select 0, %s13, %s11
  $region1: #{mvae_projector_forward.1} parent=0
    #allocation2 [shape = 'u8[4096]{0}', space=vmem, size = 0x1000, scoped, tag = 'output window, operand 0, single buffered']
    #allocation3 [shape = 's32[1]{0}', space=sflag, size = 0x4, scoped, tag = 'scoped memory for mvae_projector_forward.1']
    %15 = vsyncpa [#allocation3], 0
    // Predicated region
    $region2: #{mvae_projector_forward.1} parent=1 // pred_check
      _
    $region3: #{mvae_projector_forward.1} parent=1 // pred_check_branch
      %17 = sbr.rel (0) target = $region5
    $region4: #{mvae_projector_forward.1} parent=1 // pred_region
      _
    $region5: #{mvae_projector_forward.1} parent=1 // pred_fallthru
      _
    // Predicated region
    $region6: #{mvae_projector_forward.1} parent=1 // pred_check
      _
    $region7: #{mvae_projector_forward.1} parent=1 // pred_check_branch
      %19 = sbr.rel (0) target = $region9
    $region8: #{mvae_projector_forward.1} parent=1 // pred_region
      _
    $region9: #{mvae_projector_forward.1} parent=1 // pred_fallthru
      _
    // Predicated region
    $region10: #{mvae_projector_forward.1} parent=1 // pred_check
      _
    $region11: #{mvae_projector_forward.1} parent=1 // pred_check_branch
      %21 = sbr.rel (0) target = $region13
    $region12: #{mvae_projector_forward.1} parent=1 // pred_region
      _
    $region13: #{mvae_projector_forward.1} parent=1 // pred_fallthru
      _
    // Predicated region
    $region14: #{mvae_projector_forward.1} parent=1 // pred_check
      _
    $region15: #{mvae_projector_forward.1} parent=1 // pred_check_branch
      %23 = sbr.rel (0) target = $region17
    $region16: #{mvae_projector_forward.1} parent=1 // pred_region
      _
    $region17: #{mvae_projector_forward.1} parent=1 // pred_fallthru
      _
    // Predicated region
    $region18: #{mvae_projector_forward.1} parent=1 // pred_check
      _
    $region19: #{mvae_projector_forward.1} parent=1 // pred_check_branch
      %25 = sbr.rel (0) target = $region21
    $region20: #{mvae_projector_forward.1} parent=1 // pred_region
      _
    $region21: #{mvae_projector_forward.1} parent=1 // pred_fallthru
      _
    // Predicated region
    $region22: #{mvae_projector_forward.1} parent=1 // pred_check
      _
    $region23: #{mvae_projector_forward.1} parent=1 // pred_check_branch
      %27 = sbr.rel (0) target = $region25
    $region24: #{mvae_projector_forward.1} parent=1 // pred_region
      _
    $region25: #{mvae_projector_forward.1} parent=1 // pred_fallthru
      _
    // Predicated region
    $region26: #{mvae_projector_forward.1} parent=1 // pred_check
      _
    $region27: #{mvae_projector_forward.1} parent=1 // pred_check_branch
      %29 = sbr.rel (0) target = $region29
    $region28: #{mvae_projector_forward.1} parent=1 // pred_region
      _
    $region29: #{mvae_projector_forward.1} parent=1 // pred_fallthru
      _
    // Predicated region
    $region30: #{mvae_projector_forward.1} parent=1 // pred_check
      _
    $region31: #{mvae_projector_forward.1} parent=1 // pred_check_branch
      %31 = sbr.rel (0) target = $region33
    $region32: #{mvae_projector_forward.1} parent=1 // pred_region
      _
    $region33: #{mvae_projector_forward.1} parent=1 // pred_fallthru
      _
    // Predicated region
    $region34: #{mvae_projector_forward.1} parent=1 // pred_check
      _
    $region35: #{mvae_projector_forward.1} parent=1 // pred_check_branch
      %33 = sbr.rel (0) target = $region37
    $region36: #{mvae_projector_forward.1} parent=1 // pred_region
      _
    $region37: #{mvae_projector_forward.1} parent=1 // pred_fallthru
      _
    // Predicated region
    $region38: #{mvae_projector_forward.1} parent=1 // pred_check
      _
    $region39: #{mvae_projector_forward.1} parent=1 // pred_check_branch
      %35 = sbr.rel (0) target = $region41
    $region40: #{mvae_projector_forward.1} parent=1 // pred_region
      _
    $region41: #{mvae_projector_forward.1} parent=1 // pred_fallthru
      _
    %v37 = vld [vmem:[%s0] sm:$0xff]
    %v38 = vpack.c.bf16 %v37, %v37
    %v39 = vld [vmem:[%s2] sm:$0xf]
    %v40 = vld [vmem:[%s2 + $0x4] sm:$0xf]
    %v41 = vld [vmem:[%s2 + $0x8] sm:$0xf]
    %v42 = vld [vmem:[%s2 + $0xc] sm:$0xf]
    %v43 = vld [vmem:[%s3] sm:$0x1]
    %v45 = vlaneseq
    %v46 = vshrl.u32 %v45, 7
    %v47 = vsub.s32 0, %v46
    %v48 = vrot.slane %v43, %v47
    %v54 = vunpack.c.l.b16 %v39
    %v55 = vunpack.c.l.b16 %v40
    %v56 = vunpack.c.l.b16 %v41
    %v57 = vunpack.c.l.b16 %v42
    %v58 = vpack.c.b16 %v55, %v54
    %v59 = vpack.c.b16 %v57, %v56
    %vm62 = vcmask 261120
    %v64 = vsel %vm62, %v38, 0
    %66 = vmatprep.subr.bf16.mxu0 0
    %67 = vmatpush1.bf16.msra.mxu0 %v58
    %68 = vmatprep.subr.bf16.mxu0 0
    %69 = vmatpush1.bf16.msra.mxu0 %v59
    %70 = vmatprep.subr.bf16.mxu0 0
    %71 = vmatpush1.bf16.msra.mxu0 0
    %72 = vmatprep.subr.bf16.mxu0 0
    %73 = vmatpush1.bf16.msra.mxu0 0
    %74 = vmatprep.subr.bf16.mxu0 0
    %75 = vmatpush1.bf16.msra.mxu0 0
    %76 = vmatprep.subr.bf16.mxu0 0
    %77 = vmatpush1.bf16.msra.mxu0 0
    %78 = vmatprep.subr.bf16.mxu0 0
    %79 = vmatpush1.bf16.msra.mxu0 0
    %80 = vmatprep.subr.bf16.mxu0 0
    %81 = vmatpush1.bf16.msra.mxu0 0
    %82 = vmatprep.subr.bf16.mxu0 0
    %83 = vmatpush1.bf16.msra.mxu0 0
    %84 = vmatprep.subr.bf16.mxu0 0
    %85 = vmatpush1.bf16.msra.mxu0 0
    %86 = vmatprep.subr.bf16.mxu0 0
    %87 = vmatpush1.bf16.msra.mxu0 0
    %88 = vmatprep.subr.bf16.mxu0 0
    %89 = vmatpush1.bf16.msra.mxu0 0
    %90 = vmatprep.subr.bf16.mxu0 0
    %91 = vmatpush1.bf16.msra.mxu0 0
    %92 = vmatprep.subr.bf16.mxu0 0
    %93 = vmatpush1.bf16.msra.mxu0 0
    %94 = vmatprep.subr.bf16.mxu0 0
    %95 = vmatpush1.bf16.msra.mxu0 0
    %96 = vmatprep.subr.bf16.mxu0 0
    %97 = vmatpush1.bf16.msra.mxu0 0
    %98 = vmatprep.mubr.bf16.mxu0 0
    %99 = vmatmul.mubr.bf16.gmra.mrb[0].mxu0 %v64
    %v100 = vpop.f32.mrb[0].mxu0
    %v101 = vadd.f32 %v48, %v100
    %v102 = vpop.f32.mrb[0].mxu0
    %v103 = vpop.f32.mrb[0].mxu0
    %v104 = vpop.f32.mrb[0].mxu0
    %105 = vdwg.mxu0
    %v106 = vrot.slane %v101, 4
    %v107 = vadd.f32 %v101, %v106
    %v108 = vrot.slane %v107, 2
    %v109 = vadd.f32 %v107, %v108
    %v110 = vrot.slane %v109, 1
    %v111 = vadd.f32 %v109, %v110
    %v112 = vrcp.pop 8.0
    %v113 = vmul.f32 %v111, %v112
    %v114 = vsub.f32 %v101, %v113
    %v115 = vmul.f32 %v114, %v114
    %v116 = vrot.slane %v115, 4
    %v117 = vadd.f32 %v115, %v116
    %v118 = vrot.slane %v117, 2
    %v119 = vadd.f32 %v117, %v118
    %v120 = vrot.slane %v119, 1
    %v121 = vadd.f32 %v119, %v120
    %v122 = vmul.f32 %v121, %v112
    %v123 = vadd.f32 %v122, 1e-05
    %v124 = vrsqrt.pop %v123
    %v125 = vmul.f32 %v114, %v124
    %v126 = vmax.f32 %v125, 0.0
    %v127 = vpack.c.bf16 %v126, %v126
    %v128 = vld [vmem:[%s4] sm:$0xf]
    %v129 = vld [vmem:[%s4 + $0x4] sm:$0xf]
    %v130 = vld [vmem:[%s4 + $0x8] sm:$0xf]
    %v131 = vld [vmem:[%s4 + $0xc] sm:$0xf]
    %v132 = vld [vmem:[%s4 + $0x10] sm:$0xf]
    %v133 = vld [vmem:[%s4 + $0x14] sm:$0xf]
    %v134 = vld [vmem:[%s4 + $0x18] sm:$0xf]
    %v135 = vld [vmem:[%s4 + $0x1c] sm:$0xf]
    %v136 = vld [vmem:[%s4 + $0x20] sm:$0xf]
    %v137 = vld [vmem:[%s4 + $0x24] sm:$0xf]
    %v138 = vld [vmem:[%s4 + $0x28] sm:$0xf]
    %v139 = vld [vmem:[%s4 + $0x2c] sm:$0xf]
    %v140 = vld [vmem:[%s4 + $0x30] sm:$0xf]
    %v141 = vld [vmem:[%s4 + $0x34] sm:$0xf]
    %v142 = vld [vmem:[%s4 + $0x38] sm:$0xf]
    %v143 = vld [vmem:[%s4 + $0x3c] sm:$0xf]
    %v144 = vld [vmem:[%s5] sm:$0x1]
    %v146 = vlaneseq
    %v147 = vshrl.u32 %v146, 7
    %v148 = vsub.s32 0, %v147
    %v149 = vrot.slane %v144, %v148
    %v167 = vunpack.c.l.b16 %v128
    %v168 = vunpack.c.l.b16 %v129
    %v169 = vunpack.c.l.b16 %v130
    %v170 = vunpack.c.l.b16 %v131
    %v171 = vunpack.c.l.b16 %v132
    %v172 = vunpack.c.l.b16 %v133
    %v173 = vunpack.c.l.b16 %v134
    %v174 = vunpack.c.l.b16 %v135
    %v175 = vunpack.c.l.b16 %v136
    %v176 = vunpack.c.l.b16 %v137
    %v177 = vunpack.c.l.b16 %v138
    %v178 = vunpack.c.l.b16 %v139
    %v179 = vunpack.c.l.b16 %v140
    %v180 = vunpack.c.l.b16 %v141
    %v181 = vunpack.c.l.b16 %v142
    %v182 = vunpack.c.l.b16 %v143
    %v183 = vpack.c.b16 %v168, %v167
    %v184 = vpack.c.b16 %v170, %v169
    %v185 = vpack.c.b16 %v172, %v171
    %v186 = vpack.c.b16 %v174, %v173
    %v187 = vpack.c.b16 %v176, %v175
    %v188 = vpack.c.b16 %v178, %v177
    %v189 = vpack.c.b16 %v180, %v179
    %v190 = vpack.c.b16 %v182, %v181
    %199 = vmatprep.subr.bf16.mxu0 0
    %200 = vmatpush1.bf16.msra.mxu0 %v183
    %201 = vmatprep.subr.bf16.mxu0 0
    %202 = vmatpush1.bf16.msra.mxu0 %v184
    %203 = vmatprep.subr.bf16.mxu0 0
    %204 = vmatpush1.bf16.msra.mxu0 %v185
    %205 = vmatprep.subr.bf16.mxu0 0
    %206 = vmatpush1.bf16.msra.mxu0 %v186
    %207 = vmatprep.subr.bf16.mxu0 0
    %208 = vmatpush1.bf16.msra.mxu0 %v187
    %209 = vmatprep.subr.bf16.mxu0 0
    %210 = vmatpush1.bf16.msra.mxu0 %v188
    %211 = vmatprep.subr.bf16.mxu0 0
    %212 = vmatpush1.bf16.msra.mxu0 %v189
    %213 = vmatprep.subr.bf16.mxu0 0
    %214 = vmatpush1.bf16.msra.mxu0 %v190
    %215 = vmatprep.subr.bf16.mxu0 0
    %216 = vmatpush1.bf16.msra.mxu0 0
    %217 = vmatprep.subr.bf16.mxu0 0
    %218 = vmatpush1.bf16.msra.mxu0 0
    %219 = vmatprep.subr.bf16.mxu0 0
    %220 = vmatpush1.bf16.msra.mxu0 0
    %221 = vmatprep.subr.bf16.mxu0 0
    %222 = vmatpush1.bf16.msra.mxu0 0
    %223 = vmatprep.subr.bf16.mxu0 0
    %224 = vmatpush1.bf16.msra.mxu0 0
    %225 = vmatprep.subr.bf16.mxu0 0
    %226 = vmatpush1.bf16.msra.mxu0 0
    %227 = vmatprep.subr.bf16.mxu0 0
    %228 = vmatpush1.bf16.msra.mxu0 0
    %229 = vmatprep.subr.bf16.mxu0 0
    %230 = vmatpush1.bf16.msra.mxu0 0
    %231 = vmatprep.mubr.bf16.mxu0 0
    %232 = vmatmul.mubr.bf16.gmra.mrb[0].mxu0 %v127
    %v233 = vpop.f32.mrb[0].mxu0
    %v234 = vadd.f32 %v149, %v233
    %v235 = vpop.f32.mrb[0].mxu0
    %v236 = vpop.f32.mrb[0].mxu0
    %v237 = vpop.f32.mrb[0].mxu0
    %238 = vdwg.mxu0
    %v239 = vsel %vm62, %v234, 0.0
    %v240 = vrot.slane %v239, 4
    %v241 = vadd.f32 %v239, %v240
    %v242 = vrot.slane %v241, 2
    %v243 = vadd.f32 %v241, %v242
    %v244 = vrot.slane %v243, 1
    %v245 = vadd.f32 %v243, %v244
    %v246 = vmul.f32 %v245, %v112
    %v247 = vsub.f32 %v234, %v246
    %v248 = vmul.f32 %v247, %v247
    %v249 = vsel %vm62, %v248, 0.0
    %v250 = vrot.slane %v249, 4
    %v251 = vadd.f32 %v249, %v250
    %v252 = vrot.slane %v251, 2
    %v253 = vadd.f32 %v251, %v252
    %v254 = vrot.slane %v253, 1
    %v255 = vadd.f32 %v253, %v254
    %v256 = vmul.f32 %v255, %v112
    %v257 = vadd.f32 %v256, 1e-05
    %v258 = vrsqrt.pop %v257
    %v259 = vmul.f32 %v247, %v258
    %v260 = vld [vmem:[%s1] sm:$0xff]
    %v261 = vpack.c.bf16 %v260, %v260
    %v262 = vld [vmem:[%s6] sm:$0xf]
    %v263 = vld [vmem:[%s6 + $0x4] sm:$0xf]
    %v264 = vld [vmem:[%s6 + $0x8] sm:$0xf]
    %v265 = vld [vmem:[%s6 + $0xc] sm:$0xf]
    %v266 = vld [vmem:[%s7] sm:$0x1]
    %v268 = vlaneseq
    %v269 = vshrl.u32 %v268, 7
    %v270 = vsub.s32 0, %v269
    %v271 = vrot.slane %v266, %v270
    %v277 = vunpack.c.l.b16 %v262
    %v278 = vunpack.c.l.b16 %v263
    %v279 = vunpack.c.l.b16 %v264
    %v280 = vunpack.c.l.b16 %v265
    %v281 = vpack.c.b16 %v278, %v277
    %v282 = vpack.c.b16 %v280, %v279
    %v286 = vsel %vm62, %v261, 0
    %288 = vmatprep.subr.bf16.mxu0 0
    %289 = vmatpush1.bf16.msra.mxu0 %v281
    %290 = vmatprep.subr.bf16.mxu0 0
    %291 = vmatpush1.bf16.msra.mxu0 %v282
    %292 = vmatprep.subr.bf16.mxu0 0
    %293 = vmatpush1.bf16.msra.mxu0 0
    %294 = vmatprep.subr.bf16.mxu0 0
    %295 = vmatpush1.bf16.msra.mxu0 0
    %296 = vmatprep.subr.bf16.mxu0 0
    %297 = vmatpush1.bf16.msra.mxu0 0
    %298 = vmatprep.subr.bf16.mxu0 0
    %299 = vmatpush1.bf16.msra.mxu0 0
    %300 = vmatprep.subr.bf16.mxu0 0
    %301 = vmatpush1.bf16.msra.mxu0 0
    %302 = vmatprep.subr.bf16.mxu0 0
    %303 = vmatpush1.bf16.msra.mxu0 0
    %304 = vmatprep.subr.bf16.mxu0 0
    %305 = vmatpush1.bf16.msra.mxu0 0
    %306 = vmatprep.subr.bf16.mxu0 0
    %307 = vmatpush1.bf16.msra.mxu0 0
    %308 = vmatprep.subr.bf16.mxu0 0
    %309 = vmatpush1.bf16.msra.mxu0 0
    %310 = vmatprep.subr.bf16.mxu0 0
    %311 = vmatpush1.bf16.msra.mxu0 0
    %312 = vmatprep.subr.bf16.mxu0 0
    %313 = vmatpush1.bf16.msra.mxu0 0
    %314 = vmatprep.subr.bf16.mxu0 0
    %315 = vmatpush1.bf16.msra.mxu0 0
    %316 = vmatprep.subr.bf16.mxu0 0
    %317 = vmatpush1.bf16.msra.mxu0 0
    %318 = vmatprep.subr.bf16.mxu0 0
    %319 = vmatpush1.bf16.msra.mxu0 0
    %320 = vmatprep.mubr.bf16.mxu0 0
    %321 = vmatmul.mubr.bf16.gmra.mrb[0].mxu0 %v286
    %v322 = vpop.f32.mrb[0].mxu0
    %v323 = vadd.f32 %v271, %v322
    %v324 = vpop.f32.mrb[0].mxu0
    %v325 = vpop.f32.mrb[0].mxu0
    %v326 = vpop.f32.mrb[0].mxu0
    %327 = vdwg.mxu0
    %v328 = vrot.slane %v323, 4
    %v329 = vadd.f32 %v323, %v328
    %v330 = vrot.slane %v329, 2
    %v331 = vadd.f32 %v329, %v330
    %v332 = vrot.slane %v331, 1
    %v333 = vadd.f32 %v331, %v332
    %v334 = vmul.f32 %v333, %v112
    %v335 = vsub.f32 %v323, %v334
    %v336 = vmul.f32 %v335, %v335
    %v337 = vrot.slane %v336, 4
    %v338 = vadd.f32 %v336, %v337
    %v339 = vrot.slane %v338, 2
    %v340 = vadd.f32 %v338, %v339
    %v341 = vrot.slane %v340, 1
    %v342 = vadd.f32 %v340, %v341
    %v343 = vmul.f32 %v342, %v112
    %v344 = vadd.f32 %v343, 1e-05
    %v345 = vrsqrt.pop %v344
    %v346 = vmul.f32 %v335, %v345
    %v347 = vmax.f32 %v346, 0.0
    %v348 = vpack.c.bf16 %v347, %v347
    %v349 = vld [vmem:[%s8] sm:$0xf]
    %v350 = vld [vmem:[%s8 + $0x4] sm:$0xf]
    %v351 = vld [vmem:[%s8 + $0x8] sm:$0xf]
    %v352 = vld [vmem:[%s8 + $0xc] sm:$0xf]
    %v353 = vld [vmem:[%s8 + $0x10] sm:$0xf]
    %v354 = vld [vmem:[%s8 + $0x14] sm:$0xf]
    %v355 = vld [vmem:[%s8 + $0x18] sm:$0xf]
    %v356 = vld [vmem:[%s8 + $0x1c] sm:$0xf]
    %v357 = vld [vmem:[%s8 + $0x20] sm:$0xf]
    %v358 = vld [vmem:[%s8 + $0x24] sm:$0xf]
    %v359 = vld [vmem:[%s8 + $0x28] sm:$0xf]
    %v360 = vld [vmem:[%s8 + $0x2c] sm:$0xf]
    %v361 = vld [vmem:[%s8 + $0x30] sm:$0xf]
    %v362 = vld [vmem:[%s8 + $0x34] sm:$0xf]
    %v363 = vld [vmem:[%s8 + $0x38] sm:$0xf]
    %v364 = vld [vmem:[%s8 + $0x3c] sm:$0xf]
    %v365 = vld [vmem:[%s9] sm:$0x1]
    %v367 = vlaneseq
    %v368 = vshrl.u32 %v367, 7
    %v369 = vsub.s32 0, %v368
    %v370 = vrot.slane %v365, %v369
    %v388 = vunpack.c.l.b16 %v349
    %v389 = vunpack.c.l.b16 %v350
    %v390 = vunpack.c.l.b16 %v351
    %v391 = vunpack.c.l.b16 %v352
    %v392 = vunpack.c.l.b16 %v353
    %v393 = vunpack.c.l.b16 %v354
    %v394 = vunpack.c.l.b16 %v355
    %v395 = vunpack.c.l.b16 %v356
    %v396 = vunpack.c.l.b16 %v357
    %v397 = vunpack.c.l.b16 %v358
    %v398 = vunpack.c.l.b16 %v359
    %v399 = vunpack.c.l.b16 %v360
    %v400 = vunpack.c.l.b16 %v361
    %v401 = vunpack.c.l.b16 %v362
    %v402 = vunpack.c.l.b16 %v363
    %v403 = vunpack.c.l.b16 %v364
    %v404 = vpack.c.b16 %v389, %v388
    %v405 = vpack.c.b16 %v391, %v390
    %v406 = vpack.c.b16 %v393, %v392
    %v407 = vpack.c.b16 %v395, %v394
    %v408 = vpack.c.b16 %v397, %v396
    %v409 = vpack.c.b16 %v399, %v398
    %v410 = vpack.c.b16 %v401, %v400
    %v411 = vpack.c.b16 %v403, %v402
    %420 = vmatprep.subr.bf16.mxu0 0
    %421 = vmatpush1.bf16.msra.mxu0 %v404
    %422 = vmatprep.subr.bf16.mxu0 0
    %423 = vmatpush1.bf16.msra.mxu0 %v405
    %424 = vmatprep.subr.bf16.mxu0 0
    %425 = vmatpush1.bf16.msra.mxu0 %v406
    %426 = vmatprep.subr.bf16.mxu0 0
    %427 = vmatpush1.bf16.msra.mxu0 %v407
    %428 = vmatprep.subr.bf16.mxu0 0
    %429 = vmatpush1.bf16.msra.mxu0 %v408
    %430 = vmatprep.subr.bf16.mxu0 0
    %431 = vmatpush1.bf16.msra.mxu0 %v409
    %432 = vmatprep.subr.bf16.mxu0 0
    %433 = vmatpush1.bf16.msra.mxu0 %v410
    %434 = vmatprep.subr.bf16.mxu0 0
    %435 = vmatpush1.bf16.msra.mxu0 %v411
    %436 = vmatprep.subr.bf16.mxu0 0
    %437 = vmatpush1.bf16.msra.mxu0 0
    %438 = vmatprep.subr.bf16.mxu0 0
    %439 = vmatpush1.bf16.msra.mxu0 0
    %440 = vmatprep.subr.bf16.mxu0 0
    %441 = vmatpush1.bf16.msra.mxu0 0
    %442 = vmatprep.subr.bf16.mxu0 0
    %443 = vmatpush1.bf16.msra.mxu0 0
    %444 = vmatprep.subr.bf16.mxu0 0
    %445 = vmatpush1.bf16.msra.mxu0 0
    %446 = vmatprep.subr.bf16.mxu0 0
    %447 = vmatpush1.bf16.msra.mxu0 0
    %448 = vmatprep.subr.bf16.mxu0 0
    %449 = vmatpush1.bf16.msra.mxu0 0
    %450 = vmatprep.subr.bf16.mxu0 0
    %451 = vmatpush1.bf16.msra.mxu0 0
    %452 = vmatprep.mubr.bf16.mxu0 0
    %453 = vmatmul.mubr.bf16.gmra.mrb[0].mxu0 %v348
    %v454 = vpop.f32.mrb[0].mxu0
    %v455 = vadd.f32 %v370, %v454
    %v456 = vpop.f32.mrb[0].mxu0
    %v457 = vpop.f32.mrb[0].mxu0
    %v458 = vpop.f32.mrb[0].mxu0
    %459 = vdwg.mxu0
    %v460 = vsel %vm62, %v455, 0.0
    %v461 = vrot.slane %v460, 4
    %v462 = vadd.f32 %v460, %v461
    %v463 = vrot.slane %v462, 2
    %v464 = vadd.f32 %v462, %v463
    %v465 = vrot.slane %v464, 1
    %v466 = vadd.f32 %v464, %v465
    %v467 = vmul.f32 %v466, %v112
    %v468 = vsub.f32 %v455, %v467
    %v469 = vmul.f32 %v468, %v468
    %v470 = vsel %vm62, %v469, 0.0
    %v471 = vrot.slane %v470, 4
    %v472 = vadd.f32 %v470, %v471
    %v473 = vrot.slane %v472, 2
    %v474 = vadd.f32 %v472, %v473
    %v475 = vrot.slane %v474, 1
    %v476 = vadd.f32 %v474, %v475
    %v477 = vmul.f32 %v476, %v112
    %v478 = vadd.f32 %v477, 1e-05
    %v479 = vrsqrt.pop %v478
    %v480 = vmul.f32 %v468, %v479
    %v481 = vmul.f32 %v259, 1.442695
    %v482 = vpow.pop %v481
    %v483 = vadd.f32 %v482, 1e-08
    %v484 = vrcp.pop %v483
    %v485 = vmul.f32 %v480, 1.442695
    %v486 = vpow.pop %v485
    %v487 = vadd.f32 %v486, 1e-08
    %v488 = vrcp.pop %v487
    %490 = vrot.lane.b32.xlu0 %v484, 112
    %v491 = vpop.permute.xlu0 %490
    %v493 = vmul.f32 %v259, %v491
    %495 = vrot.lane.b32.xlu0 %v488, 112
    %v496 = vpop.permute.xlu0 %495
    %v498 = vmul.f32 %v480, %v496
    %v499 = vadd.f32 %v493, %v498
    %v500 = vadd.f32 %v484, 1.0
    %v501 = vadd.f32 %v500, %v488
    %v502 = vrcp.pop %v501
    %504 = vrot.lane.b32.xlu0 %v502, 112
    %v505 = vpop.permute.xlu0 %504
    %v507 = vmul.f32 %v499, %v505
    %vm508 = vcmask 130048
    %509 = vst.msk [vmem:[#allocation2] sm:$0xff] %vm508, %v507
    // Predicated region
    $region42: #{mvae_projector_forward.1} parent=1 // pred_check
      _
    $region43: #{mvae_projector_forward.1} parent=1 // pred_check_branch
      %511 = sbr.rel (0) target = $region45
    $region44: #{mvae_projector_forward.1} parent=1 // pred_region
      %s513 = ssub.s32 128, 128
      %514 = vsyncadd [#allocation3], %s513
      %s516 = sshll.u32 [#allocation2], 4
      %s517 = int_to_ptr.vmem [resolvable:$true] %s516
      %519 = dma.vmem_to_hbm [thread:$0]  %s517, 128, %s10, [#allocation3]
    $region45: #{mvae_projector_forward.1} parent=1 // pred_fallthru
      _
    // Predicated region
    $region46: #{mvae_projector_forward.1} parent=1 // pred_check
      _
    $region47: #{mvae_projector_forward.1} parent=1 // pred_check_branch
      %521 = sbr.rel (0) target = $region49
    $region48: #{mvae_projector_forward.1} parent=1 // pred_region
      %522 = dma.done [#allocation3], 128
    $region49: #{mvae_projector_forward.1} parent=1 // pred_fallthru
      _
    %523 = vsyncpa [#allocation3], 1

</llo_original>
